<compile_context>
chip_gen: v7x
topology: tpu7x:2x2x1
jax: 0.10.0
libtpu: 0.0.40
codegen_flags: <defaults>
</compile_context>

<pallas_src>
import jax
import jax.numpy as jnp
from jax.experimental import pallas as pl
from jax.experimental.pallas import tpu as pltpu


def _round_up(x, m):
    return ((x + m - 1) // m) * m


def qnet_kernel(x_ref, w1_ref, b1_ref, w2_ref, b2_ref, w3_ref, b3_ref, o_ref):
    cd = w1_ref.dtype  # matmul compute dtype (f32 or bf16); accumulation is f32

    # Layer 1: Linear + ReLU  (MXU matmul, f32 accumulation; bias/ReLU on VPU in f32)
    h1 = jnp.dot(x_ref[...].astype(cd), w1_ref[...],
                 preferred_element_type=jnp.float32)
    h1 = jnp.maximum(h1 + b1_ref[...], 0.0)

    # Layer 2: Linear + ReLU
    h2 = jnp.dot(h1.astype(cd), w2_ref[...],
                 preferred_element_type=jnp.float32)
    h2 = jnp.maximum(h2 + b2_ref[...], 0.0)

    # Layer 3: Linear (Q-values, no activation); output columns are lane-dense.
    q = jnp.dot(h2.astype(cd), w3_ref[...],
                preferred_element_type=jnp.float32)
    o_ref[...] = (q + b3_ref[...]).astype(o_ref.dtype)


def prepare_params(params, *, compute_dtype=jnp.float32, lane=128):
    """One-time parameter preparation (hoisted out of the forward path).

    Zero-pads the hidden width and the Q-value columns up to `lane` (=128) so
    every kernel intermediate and the output tile are lane-dense, and
    optionally casts the weight matrices to `compute_dtype` (e.g. bf16) for
    the MXU.  Biases stay f32.  Zero padding keeps the math exact.
    """
    w1, b1, w2, b2, w3, b3 = params
    hidden = w1.shape[1]
    action_dim = w3.shape[1]
    hp = _round_up(hidden, lane)       # 64  -> 128
    op = _round_up(action_dim, lane)   # 4   -> 128

    w1p = jnp.pad(w1, ((0, 0), (0, hp - hidden))).astype(compute_dtype)
    b1p = jnp.pad(b1, ((0, 0), (0, hp - hidden))).astype(jnp.float32)
    w2p = jnp.pad(w2, ((0, hp - hidden), (0, hp - hidden))).astype(compute_dtype)
    b2p = jnp.pad(b2, ((0, 0), (0, hp - hidden))).astype(jnp.float32)
    w3p = jnp.pad(w3, ((0, hp - hidden), (0, op - action_dim))).astype(compute_dtype)
    b3p = jnp.pad(b3, ((0, 0), (0, op - action_dim))).astype(jnp.float32)
    return {"params": (w1p, b1p, w2p, b2p, w3p, b3p), "action_dim": action_dim}


def lunar_lander_qnet_forward(x, prepared, *, block_batch=None):
    """x: [batch, state_dim] f32 -> [batch, action_dim] f32 Q-values."""
    w1, b1, w2, b2, w3, b3 = prepared["params"]
    action_dim = prepared["action_dim"]
    batch, state_dim = x.shape
    out_cols = w3.shape[1]

    # --- Adaptive batch tiling --------------------------------------------
    # One big tile minimizes per-grid-step overhead (dominant at these sizes
    # on v5e/v6e); for larger batches use >=2 tiles so v7x's two TensorCores
    # both get work.  Cap at 1024 rows/tile (<2 MB of VMEM tiles, well under
    # every generation's budget incl. v7x's 64 MiB).
    rounded = _round_up(batch, 8)
    if block_batch is None:
        want_tiles = 2 if rounded >= 256 else 1
        block_batch = _round_up(pl.cdiv(rounded, want_tiles), 8)
    block_batch = max(8, min(_round_up(block_batch, 8), 1024, rounded))
    n_tiles = pl.cdiv(batch, block_batch)

    # Weights/biases: full-array blocks with constant index_maps -> DMA'd into
    # VMEM once and kept resident across all batch-tile grid steps.
    resident = lambda a: pl.BlockSpec(a.shape, lambda i: (0,) * a.ndim)

    q_padded = pl.pallas_call(
        qnet_kernel,
        out_shape=jax.ShapeDtypeStruct((batch, out_cols), jnp.float32),
        grid=(n_tiles,),
        in_specs=[
            pl.BlockSpec((block_batch, state_dim), lambda i: (i, 0)),
            resident(w1), resident(b1),
            resident(w2), resident(b2),
            resident(w3), resident(b3),
        ],
        out_specs=pl.BlockSpec((block_batch, out_cols), lambda i: (i, 0)),
        compiler_params=pltpu.CompilerParams(
            dimension_semantics=("parallel",)),
    )(x, w1, b1, w2, b2, w3, b3)

    # Only the cheap column slice remains in the per-call path.
    return q_padded[:, :action_dim]


def init_params(key, state_dim, action_dim, hidden_dim=64):
    """Deterministic init mimicking nn.Linear default: U(-1/sqrt(fan_in), +).

    Weight layout is [in_features, out_features] (PyTorch W.T) so the kernel
    computes x @ W + b, matching nn.Linear semantics exactly.
    """
    def linear(k, fan_in, fan_out):
        kw, kb = jax.random.split(k)
        bound = 1.0 / jnp.sqrt(jnp.float32(fan_in))
        w = jax.random.uniform(kw, (fan_in, fan_out), jnp.float32, -bound, bound)
        b = jax.random.uniform(kb, (1, fan_out), jnp.float32, -bound, bound)
        return w, b

    k1, k2, k3 = jax.random.split(key, 3)
    w1, b1 = linear(k1, state_dim, hidden_dim)
    w2, b2 = linear(k2, hidden_dim, hidden_dim)
    w3, b3 = linear(k3, hidden_dim, action_dim)
    return (w1, b1, w2, b2, w3, b3)


def reference_forward(x, params):
    """Pure-JAX reference (identical math) for a sanity check."""
    w1, b1, w2, b2, w3, b3 = params
    h1 = jnp.maximum(x @ w1 + b1, 0.0)
    h2 = jnp.maximum(h1 @ w2 + b2, 0.0)
    return h2 @ w3 + b3


if __name__ == "__main__":
    # LunarLander-v2: state_dim=8, action_dim=4; hidden_dim=64 (module default).
    state_dim, action_dim, hidden_dim = 8, 4, 64

    key = jax.random.PRNGKey(0)
    k_params, k_x = jax.random.split(key)
    params = init_params(k_params, state_dim, action_dim, hidden_dim)
    prepared = prepare_params(params)          # one-time padding; f32 weights

    # Small batch (action-selection sized): single 8-row tile, one grid step.
    x = jax.random.normal(k_x, (2, state_dim), jnp.float32)
    q = lunar_lander_qnet_forward(x, prepared)
    jax.block_until_ready(q)
    q_ref = reference_forward(x, params)
    assert q.shape == (2, action_dim)
    assert jnp.allclose(q, q_ref, atol=1e-5, rtol=1e-5)

    # Training-sized batch, non-multiple of the tile: exercises the 2-tile
    # (v7x) path and the ragged, masked last tile with no x padding.
    x_big = jax.random.normal(jax.random.PRNGKey(1), (257, state_dim), jnp.float32)
    q_big = lunar_lander_qnet_forward(x_big, prepared)
    jax.block_until_ready(q_big)
    assert q_big.shape == (257, action_dim)
    assert jnp.allclose(q_big, reference_forward(x_big, params), atol=1e-5, rtol=1e-5)

    # Optional bf16-matmul path (weights cast once in prepare_params); matmul
    # still accumulates in f32, bias+ReLU in f32.  Looser tolerance per review.
    prepared_bf16 = prepare_params(params, compute_dtype=jnp.bfloat16)
    q_bf16 = lunar_lander_qnet_forward(x_big, prepared_bf16)
    jax.block_until_ready(q_bf16)
    assert q_bf16.shape == (257, action_dim)
    assert jnp.allclose(q_bf16, reference_forward(x_big, params), atol=1e-1, rtol=1e-1)

    print("KERNEL_OK")
</pallas_src>

<mosaic_0001>
module attributes {stable_mosaic.version = 11 : i64} {
  func.func @qnet_kernel(%arg0: i32, %arg1: memref<8x8xf32, #tpu.memory_space<vmem>>, %arg2: memref<8x128xf32, #tpu.memory_space<vmem>>, %arg3: memref<1x128xf32, #tpu.memory_space<vmem>>, %arg4: memref<128x128xf32, #tpu.memory_space<vmem>>, %arg5: memref<1x128xf32, #tpu.memory_space<vmem>>, %arg6: memref<128x128xf32, #tpu.memory_space<vmem>>, %arg7: memref<1x128xf32, #tpu.memory_space<vmem>>, %arg8: memref<8x128xf32, #tpu.memory_space<vmem>>) attributes {dimension_semantics = [#tpu.dimension_semantics<parallel>], iteration_bounds = array<i64: 1>, scalar_prefetch = 0 : i64, scratch_operands = 0 : i64, tpu.core_type = #tpu.core_type<tc>, window_params = [{transform_indices = @transform_0, window_bounds = array<i64: 8, 8>}, {pipeline_mode = #tpu.pipeline_mode<synchronous>, transform_indices = @transform_1, window_bounds = array<i64: 8, 128>}, {pipeline_mode = #tpu.pipeline_mode<synchronous>, transform_indices = @transform_2, window_bounds = array<i64: 1, 128>}, {pipeline_mode = #tpu.pipeline_mode<synchronous>, transform_indices = @transform_3, window_bounds = array<i64: 128, 128>}, {pipeline_mode = #tpu.pipeline_mode<synchronous>, transform_indices = @transform_4, window_bounds = array<i64: 1, 128>}, {pipeline_mode = #tpu.pipeline_mode<synchronous>, transform_indices = @transform_5, window_bounds = array<i64: 128, 128>}, {pipeline_mode = #tpu.pipeline_mode<synchronous>, transform_indices = @transform_6, window_bounds = array<i64: 1, 128>}, {transform_indices = @transform_7, window_bounds = array<i64: 8, 128>}]} {
    %c0 = arith.constant 0 : index
    %c0_0 = arith.constant 0 : index
    %0 = vector.load %arg1[%c0, %c0_0] : memref<8x8xf32, #tpu.memory_space<vmem>>, vector<8x8xf32>
    %c0_1 = arith.constant 0 : index
    %c0_2 = arith.constant 0 : index
    %1 = vector.load %arg2[%c0_1, %c0_2] : memref<8x128xf32, #tpu.memory_space<vmem>>, vector<8x128xf32>
    %cst = arith.constant dense<0.000000e+00> : vector<8x128xf32>
    %2 = tpu.matmul %0, %1, %cst {dimension_numbers = #tpu.dot_dimension_numbers<[1], [0], [0], [1], [0, 0, 1, 1], [], []>} : vector<8x8xf32>, vector<8x128xf32>, vector<8x128xf32> -> vector<8x128xf32>
    %c0_3 = arith.constant 0 : index
    %c0_4 = arith.constant 0 : index
    %3 = vector.load %arg3[%c0_3, %c0_4] : memref<1x128xf32, #tpu.memory_space<vmem>>, vector<1x128xf32>
    %4 = vector.broadcast %3 : vector<1x128xf32> to vector<8x128xf32>
    %5 = arith.addf %2, %4 : vector<8x128xf32>
    %cst_5 = arith.constant 0.000000e+00 : f32
    %6 = vector.broadcast %cst_5 : f32 to vector<8x128xf32>
    %7 = arith.maximumf %5, %6 : vector<8x128xf32>
    %c0_6 = arith.constant 0 : index
    %c0_7 = arith.constant 0 : index
    %8 = vector.load %arg4[%c0_6, %c0_7] : memref<128x128xf32, #tpu.memory_space<vmem>>, vector<128x128xf32>
    %cst_8 = arith.constant dense<0.000000e+00> : vector<8x128xf32>
    %9 = tpu.matmul %7, %8, %cst_8 {dimension_numbers = #tpu.dot_dimension_numbers<[1], [0], [0], [1], [0, 0, 1, 1], [], []>} : vector<8x128xf32>, vector<128x128xf32>, vector<8x128xf32> -> vector<8x128xf32>
    %c0_9 = arith.constant 0 : index
    %c0_10 = arith.constant 0 : index
    %10 = vector.load %arg5[%c0_9, %c0_10] : memref<1x128xf32, #tpu.memory_space<vmem>>, vector<1x128xf32>
    %11 = vector.broadcast %10 : vector<1x128xf32> to vector<8x128xf32>
    %12 = arith.addf %9, %11 : vector<8x128xf32>
    %cst_11 = arith.constant 0.000000e+00 : f32
    %13 = vector.broadcast %cst_11 : f32 to vector<8x128xf32>
    %14 = arith.maximumf %12, %13 : vector<8x128xf32>
    %c0_12 = arith.constant 0 : index
    %c0_13 = arith.constant 0 : index
    %15 = vector.load %arg6[%c0_12, %c0_13] : memref<128x128xf32, #tpu.memory_space<vmem>>, vector<128x128xf32>
    %cst_14 = arith.constant dense<0.000000e+00> : vector<8x128xf32>
    %16 = tpu.matmul %14, %15, %cst_14 {dimension_numbers = #tpu.dot_dimension_numbers<[1], [0], [0], [1], [0, 0, 1, 1], [], []>} : vector<8x128xf32>, vector<128x128xf32>, vector<8x128xf32> -> vector<8x128xf32>
    %c0_15 = arith.constant 0 : index
    %c0_16 = arith.constant 0 : index
    %17 = vector.load %arg7[%c0_15, %c0_16] : memref<1x128xf32, #tpu.memory_space<vmem>>, vector<1x128xf32>
    %18 = vector.broadcast %17 : vector<1x128xf32> to vector<8x128xf32>
    %19 = arith.addf %16, %18 : vector<8x128xf32>
    %c0_17 = arith.constant 0 : index
    %c0_18 = arith.constant 0 : index
    %20 = vector.load %arg8[%c0_17, %c0_18] : memref<8x128xf32, #tpu.memory_space<vmem>>, vector<8x128xf32>
    tpu.vector_store %arg8[%c0_17, %c0_18], %19 {strides = array<i32>} : memref<8x128xf32, #tpu.memory_space<vmem>>, vector<8x128xf32>,
    return
  }
  func.func @transform_0(%arg0: i32) -> (i32, i32) {
    %c0_i32 = arith.constant 0 : i32
    %c0_i32_0 = arith.constant 0 : i32
    return %arg0, %c0_i32 : i32, i32
  }
  func.func @transform_1(%arg0: i32) -> (i32, i32) {
    %c0_i32 = arith.constant 0 : i32
    %c0_i32_0 = arith.constant 0 : i32
    %c0_i32_1 = arith.constant 0 : i32
    return %c0_i32, %c0_i32_0 : i32, i32
  }
  func.func @transform_2(%arg0: i32) -> (i32, i32) {
    %c0_i32 = arith.constant 0 : i32
    %c0_i32_0 = arith.constant 0 : i32
    %c0_i32_1 = arith.constant 0 : i32
    return %c0_i32, %c0_i32_0 : i32, i32
  }
  func.func @transform_3(%arg0: i32) -> (i32, i32) {
    %c0_i32 = arith.constant 0 : i32
    %c0_i32_0 = arith.constant 0 : i32
    %c0_i32_1 = arith.constant 0 : i32
    return %c0_i32, %c0_i32_0 : i32, i32
  }
  func.func @transform_4(%arg0: i32) -> (i32, i32) {
    %c0_i32 = arith.constant 0 : i32
    %c0_i32_0 = arith.constant 0 : i32
    %c0_i32_1 = arith.constant 0 : i32
    return %c0_i32, %c0_i32_0 : i32, i32
  }
  func.func @transform_5(%arg0: i32) -> (i32, i32) {
    %c0_i32 = arith.constant 0 : i32
    %c0_i32_0 = arith.constant 0 : i32
    %c0_i32_1 = arith.constant 0 : i32
    return %c0_i32, %c0_i32_0 : i32, i32
  }
  func.func @transform_6(%arg0: i32) -> (i32, i32) {
    %c0_i32 = arith.constant 0 : i32
    %c0_i32_0 = arith.constant 0 : i32
    %c0_i32_1 = arith.constant 0 : i32
    return %c0_i32, %c0_i32_0 : i32, i32
  }
  func.func @transform_7(%arg0: i32) -> (i32, i32) {
    %c0_i32 = arith.constant 0 : i32
    %c0_i32_0 = arith.constant 0 : i32
    return %arg0, %c0_i32 : i32, i32
  }
}

</mosaic_0001>

<llo_original>
// kernel: tpu_custom_call.1
$region0: #{tpu_custom_call.1}
  #allocation0 [shape = 'u32[]', space=smem, size = 0x4, offset = 0x4, fixed_abs, tag = 'smem constant byte address 0x4 - core index']
  #allocation1 [shape = 'u32[144,128]{1,0:T(1,128)}', space=vmem, size = 0x12000, scoped, tag = 'internal scratch']
  %s0 = inlined_call_operand.hbm [shape: f32[2,8], index: 0, kind: input, shape index: {}]
  %s1 = inlined_call_operand.hbm [shape: f32[8,128], index: 1, kind: input, shape index: {}]
  %s2 = inlined_call_operand.vmem [shape: f32[1,128], index: 2, kind: input, shape index: {}]
  %s3 = inlined_call_operand.hbm [shape: f32[128,128], index: 3, kind: input, shape index: {}]
  %s4 = inlined_call_operand.vmem [shape: f32[1,128], index: 4, kind: input, shape index: {}]
  %s5 = inlined_call_operand.hbm [shape: f32[128,128], index: 5, kind: input, shape index: {}]
  %s6 = inlined_call_operand.vmem [shape: f32[1,128], index: 6, kind: input, shape index: {}]
  %s7 = inlined_call_operand.hbm [shape: f32[2,128], index: 7, kind: output, shape index: {}]
  %s8 = sld [smem:[#allocation0]]
  $region54: #{tpu_custom_call.1} parent=0
    _
  %s10 = ssub.s32 1, %s8
  %s11 = scalar_select 0, %s10, %s8
  $region1: #{tpu_custom_call.1} parent=0
    #allocation2 [shape = 'u8[4096]{0}', space=vmem, size = 0x1000, scoped, tag = 'input window, operand 0, single buffered']
    #allocation3 [shape = 's32[1]{0}', space=sflag, size = 0x4, scoped, tag = 'scoped memory for tpu_custom_call.1']
    #allocation4 [shape = 's32[1]{0}', space=sflag, size = 0x4, scoped, tag = 'scoped memory for tpu_custom_call.1']
    #allocation5 [shape = 'u8[4096]{0}', space=vmem, size = 0x1000, scoped, tag = 'input window, operand 1, single buffered']
    #allocation6 [shape = 's32[1]{0}', space=sflag, size = 0x4, scoped, tag = 'scoped memory for tpu_custom_call.1']
    #allocation7 [shape = 'u8[65536]{0}', space=vmem, size = 0x10000, scoped, tag = 'input window, operand 3, single buffered']
    #allocation8 [shape = 'u8[65536]{0}', space=vmem, size = 0x10000, scoped, tag = 'input window, operand 5, single buffered']
    #allocation9 [shape = 's32[1]{0}', space=sflag, size = 0x4, scoped, tag = 'scoped memory for tpu_custom_call.1']
    #allocation10 [shape = 'u8[4096]{0}', space=vmem, size = 0x1000, scoped, tag = 'output window, operand 0, single buffered']
    %12 = vsyncpa [#allocation3], 0
    %13 = vsyncpa [#allocation6], 0
    %14 = vsyncpa [#allocation9], 0
    %15 = vsyncpa [#allocation4], 0
    // Predicated region
    $region2: #{tpu_custom_call.1} parent=1 // pred_check
      _
    $region3: #{tpu_custom_call.1} parent=1 // pred_check_branch
      %17 = sbr.rel (0) target = $region5
    $region4: #{tpu_custom_call.1} parent=1 // pred_region
      %s19 = ssub.s32 128, 32
      %20 = vsyncadd [#allocation3], %s19
      %s21 = sshll.u32 [#allocation2], 4
      %s22 = int_to_ptr.vmem [resolvable:$true] %s21
      %27 = dma.hbm_to_vmem [thread:$0]  %s0, 32, %s22, [#allocation3], 32, 32, 2
    $region5: #{tpu_custom_call.1} parent=1 // pred_fallthru
      _
    // Predicated region
    $region6: #{tpu_custom_call.1} parent=1 // pred_check
      _
    $region7: #{tpu_custom_call.1} parent=1 // pred_check_branch
      %29 = sbr.rel (0) target = $region9
    $region8: #{tpu_custom_call.1} parent=1 // pred_region
      %s31 = ssub.s32 128, 128
      %32 = vsyncadd [#allocation6], %s31
      %s34 = sshll.u32 [#allocation5], 4
      %s35 = int_to_ptr.vmem [resolvable:$true] %s34
      %37 = dma.hbm_to_vmem [thread:$0]  %s1, 128, %s35, [#allocation6]
    $region9: #{tpu_custom_call.1} parent=1 // pred_fallthru
      _
    // Predicated region
    $region10: #{tpu_custom_call.1} parent=1 // pred_check
      _
    $region11: #{tpu_custom_call.1} parent=1 // pred_check_branch
      %39 = sbr.rel (0) target = $region13
    $region12: #{tpu_custom_call.1} parent=1 // pred_region
      _
    $region13: #{tpu_custom_call.1} parent=1 // pred_fallthru
      _
    // Predicated region
    $region14: #{tpu_custom_call.1} parent=1 // pred_check
      _
    $region15: #{tpu_custom_call.1} parent=1 // pred_check_branch
      %41 = sbr.rel (0) target = $region17
    $region16: #{tpu_custom_call.1} parent=1 // pred_region
      %s43 = ssub.s32 2048, 2048
      %44 = vsyncadd [#allocation6], %s43
      %s45 = sshll.u32 [#allocation7], 4
      %s46 = int_to_ptr.vmem [resolvable:$true] %s45
      %51 = dma.hbm_to_vmem [thread:$0]  %s3, 2048, %s46, [#allocation6], 128, 128, 8
    $region17: #{tpu_custom_call.1} parent=1 // pred_fallthru
      _
    // Predicated region
    $region18: #{tpu_custom_call.1} parent=1 // pred_check
      _
    $region19: #{tpu_custom_call.1} parent=1 // pred_check_branch
      %53 = sbr.rel (0) target = $region21
    $region20: #{tpu_custom_call.1} parent=1 // pred_region
      _
    $region21: #{tpu_custom_call.1} parent=1 // pred_fallthru
      _
    // Predicated region
    $region22: #{tpu_custom_call.1} parent=1 // pred_check
      _
    $region23: #{tpu_custom_call.1} parent=1 // pred_check_branch
      %55 = sbr.rel (0) target = $region25
    $region24: #{tpu_custom_call.1} parent=1 // pred_region
      %s57 = ssub.s32 2048, 2048
      %58 = vsyncadd [#allocation9], %s57
      %s59 = sshll.u32 [#allocation8], 4
      %s60 = int_to_ptr.vmem [resolvable:$true] %s59
      %65 = dma.hbm_to_vmem [thread:$0]  %s5, 2048, %s60, [#allocation9], 128, 128, 8
    $region25: #{tpu_custom_call.1} parent=1 // pred_fallthru
      _
    // Predicated region
    $region26: #{tpu_custom_call.1} parent=1 // pred_check
      _
    $region27: #{tpu_custom_call.1} parent=1 // pred_check_branch
      %67 = sbr.rel (0) target = $region29
    $region28: #{tpu_custom_call.1} parent=1 // pred_region
      _
    $region29: #{tpu_custom_call.1} parent=1 // pred_fallthru
      _
    // Predicated region
    $region30: #{tpu_custom_call.1} parent=1 // pred_check
      _
    $region31: #{tpu_custom_call.1} parent=1 // pred_check_branch
      %69 = sbr.rel (0) target = $region33
    $region32: #{tpu_custom_call.1} parent=1 // pred_region
      %70 = dma.done [#allocation3], 128
    $region33: #{tpu_custom_call.1} parent=1 // pred_fallthru
      _
    // Predicated region
    $region34: #{tpu_custom_call.1} parent=1 // pred_check
      _
    $region35: #{tpu_custom_call.1} parent=1 // pred_check_branch
      %72 = sbr.rel (0) target = $region37
    $region36: #{tpu_custom_call.1} parent=1 // pred_region
      %73 = dma.done [#allocation6], 128
    $region37: #{tpu_custom_call.1} parent=1 // pred_fallthru
      _
    // Predicated region
    $region38: #{tpu_custom_call.1} parent=1 // pred_check
      _
    $region39: #{tpu_custom_call.1} parent=1 // pred_check_branch
      %75 = sbr.rel (0) target = $region41
    $region40: #{tpu_custom_call.1} parent=1 // pred_region
      %76 = dma.done [#allocation6], 2048
    $region41: #{tpu_custom_call.1} parent=1 // pred_fallthru
      _
    // Predicated region
    $region42: #{tpu_custom_call.1} parent=1 // pred_check
      _
    $region43: #{tpu_custom_call.1} parent=1 // pred_check_branch
      %78 = sbr.rel (0) target = $region45
    $region44: #{tpu_custom_call.1} parent=1 // pred_region
      %79 = dma.done [#allocation9], 2048
    $region45: #{tpu_custom_call.1} parent=1 // pred_fallthru
      _
    %v80 = vld [vmem:[#allocation2] sm:$0xff]
    %v81 = vld [vmem:[#allocation5] sm:$0xff]
    %v82 = vld [vmem:[%s2] sm:$0x1]
    %v84 = vlaneseq
    %v85 = vshrl.u32 %v84, 7
    %v86 = vsub.s32 0, %v85
    %v87 = vrot.slane %v82, %v86
    %vm89 = vcmask 64512
    %v91 = vsel %vm89, %v80, 0
    %93 = vmatprep.subr.mxu0 0.0
    %94 = vmatpush1.msra.mxu0 %v81
    %95 = vmatprep.subr.mxu0 0.0
    %96 = vmatpush1.msra.mxu0 0.0
    %97 = vmatprep.subr.mxu0 0.0
    %98 = vmatpush1.msra.mxu0 0.0
    %99 = vmatprep.subr.mxu0 0.0
    %100 = vmatpush1.msra.mxu0 0.0
    %101 = vmatprep.subr.mxu0 0.0
    %102 = vmatpush1.msra.mxu0 0.0
    %103 = vmatprep.subr.mxu0 0.0
    %104 = vmatpush1.msra.mxu0 0.0
    %105 = vmatprep.subr.mxu0 0.0
    %106 = vmatpush1.msra.mxu0 0.0
    %107 = vmatprep.subr.mxu0 0.0
    %108 = vmatpush1.msra.mxu0 0.0
    %109 = vmatprep.subr.mxu0 0.0
    %110 = vmatpush1.msra.mxu0 0.0
    %111 = vmatprep.subr.mxu0 0.0
    %112 = vmatpush1.msra.mxu0 0.0
    %113 = vmatprep.subr.mxu0 0.0
    %114 = vmatpush1.msra.mxu0 0.0
    %115 = vmatprep.subr.mxu0 0.0
    %116 = vmatpush1.msra.mxu0 0.0
    %117 = vmatprep.subr.mxu0 0.0
    %118 = vmatpush1.msra.mxu0 0.0
    %119 = vmatprep.subr.mxu0 0.0
    %120 = vmatpush1.msra.mxu0 0.0
    %121 = vmatprep.subr.mxu0 0.0
    %122 = vmatpush1.msra.mxu0 0.0
    %123 = vmatprep.subr.mxu0 0.0
    %124 = vmatpush1.msra.mxu0 0.0
    %125 = vmatprep.subr.mxu0 0.0
    %126 = vmatpush1.msra.mxu0 0.0
    %127 = vmatprep.subr.mxu0 0.0
    %128 = vmatpush1.msra.mxu0 0.0
    %129 = vmatprep.subr.mxu0 0.0
    %130 = vmatpush1.msra.mxu0 0.0
    %131 = vmatprep.subr.mxu0 0.0
    %132 = vmatpush1.msra.mxu0 0.0
    %133 = vmatprep.subr.mxu0 0.0
    %134 = vmatpush1.msra.mxu0 0.0
    %135 = vmatprep.subr.mxu0 0.0
    %136 = vmatpush1.msra.mxu0 0.0
    %137 = vmatprep.subr.mxu0 0.0
    %138 = vmatpush1.msra.mxu0 0.0
    %139 = vmatprep.subr.mxu0 0.0
    %140 = vmatpush1.msra.mxu0 0.0
    %141 = vmatprep.subr.mxu0 0.0
    %142 = vmatpush1.msra.mxu0 0.0
    %143 = vmatprep.subr.mxu0 0.0
    %144 = vmatpush1.msra.mxu0 0.0
    %145 = vmatprep.subr.mxu0 0.0
    %146 = vmatpush1.msra.mxu0 0.0
    %147 = vmatprep.subr.mxu0 0.0
    %148 = vmatpush1.msra.mxu0 0.0
    %149 = vmatprep.subr.mxu0 0.0
    %150 = vmatpush1.msra.mxu0 0.0
    %151 = vmatprep.subr.mxu0 0.0
    %152 = vmatpush1.msra.mxu0 0.0
    %153 = vmatprep.subr.mxu0 0.0
    %154 = vmatpush1.msra.mxu0 0.0
    %155 = vmatprep.subr.mxu0 0.0
    %156 = vmatpush1.msra.mxu0 0.0
    %157 = vmatprep.mubr.f32.mxu0 0.0
    %158 = vmatmul.mubr.f32.gmra.mrb[0].mxu0 %v91
    %v159 = vpop.f32.mrb[0].mxu0
    %v160 = vadd.f32 %v87, %v159
    %v161 = vpop.f32.mrb[0].mxu0
    %162 = vdwg.mxu0
    %v163 = vmax.f32 %v160, 0.0
    %v164 = vld [vmem:[#allocation7] sm:$0xff]
    %v165 = vld [vmem:[#allocation7 + $0x8] sm:$0xff]
    %v166 = vld [vmem:[#allocation7 + $0x10] sm:$0xff]
    %v167 = vld [vmem:[#allocation7 + $0x18] sm:$0xff]
    %v168 = vld [vmem:[#allocation7 + $0x20] sm:$0xff]
    %v169 = vld [vmem:[#allocation7 + $0x28] sm:$0xff]
    %v170 = vld [vmem:[#allocation7 + $0x30] sm:$0xff]
    %v171 = vld [vmem:[#allocation7 + $0x38] sm:$0xff]
    %v172 = vld [vmem:[#allocation7 + $0x40] sm:$0xff]
    %v173 = vld [vmem:[#allocation7 + $0x48] sm:$0xff]
    %v174 = vld [vmem:[#allocation7 + $0x50] sm:$0xff]
    %v175 = vld [vmem:[#allocation7 + $0x58] sm:$0xff]
    %v176 = vld [vmem:[#allocation7 + $0x60] sm:$0xff]
    %v177 = vld [vmem:[#allocation7 + $0x68] sm:$0xff]
    %v178 = vld [vmem:[#allocation7 + $0x70] sm:$0xff]
    %v179 = vld [vmem:[#allocation7 + $0x78] sm:$0xff]
    %v180 = vld [vmem:[%s4] sm:$0x1]
    %v182 = vlaneseq
    %v183 = vshrl.u32 %v182, 7
    %v184 = vsub.s32 0, %v183
    %v185 = vrot.slane %v180, %v184
    %187 = vmatprep.subr.mxu0 0.0
    %188 = vmatpush1.msra.mxu0 %v164
    %189 = vmatprep.subr.mxu0 0.0
    %190 = vmatpush1.msra.mxu0 %v165
    %191 = vmatprep.subr.mxu0 0.0
    %192 = vmatpush1.msra.mxu0 %v166
    %193 = vmatprep.subr.mxu0 0.0
    %194 = vmatpush1.msra.mxu0 %v167
    %195 = vmatprep.subr.mxu0 0.0
    %196 = vmatpush1.msra.mxu0 %v168
    %197 = vmatprep.subr.mxu0 0.0
    %198 = vmatpush1.msra.mxu0 %v169
    %199 = vmatprep.subr.mxu0 0.0
    %200 = vmatpush1.msra.mxu0 %v170
    %201 = vmatprep.subr.mxu0 0.0
    %202 = vmatpush1.msra.mxu0 %v171
    %203 = vmatprep.subr.mxu0 0.0
    %204 = vmatpush1.msra.mxu0 %v172
    %205 = vmatprep.subr.mxu0 0.0
    %206 = vmatpush1.msra.mxu0 %v173
    %207 = vmatprep.subr.mxu0 0.0
    %208 = vmatpush1.msra.mxu0 %v174
    %209 = vmatprep.subr.mxu0 0.0
    %210 = vmatpush1.msra.mxu0 %v175
    %211 = vmatprep.subr.mxu0 0.0
    %212 = vmatpush1.msra.mxu0 %v176
    %213 = vmatprep.subr.mxu0 0.0
    %214 = vmatpush1.msra.mxu0 %v177
    %215 = vmatprep.subr.mxu0 0.0
    %216 = vmatpush1.msra.mxu0 %v178
    %217 = vmatprep.subr.mxu0 0.0
    %218 = vmatpush1.msra.mxu0 %v179
    %219 = vmatprep.subr.mxu0 0.0
    %220 = vmatpush1.msra.mxu0 0.0
    %221 = vmatprep.subr.mxu0 0.0
    %222 = vmatpush1.msra.mxu0 0.0
    %223 = vmatprep.subr.mxu0 0.0
    %224 = vmatpush1.msra.mxu0 0.0
    %225 = vmatprep.subr.mxu0 0.0
    %226 = vmatpush1.msra.mxu0 0.0
    %227 = vmatprep.subr.mxu0 0.0
    %228 = vmatpush1.msra.mxu0 0.0
    %229 = vmatprep.subr.mxu0 0.0
    %230 = vmatpush1.msra.mxu0 0.0
    %231 = vmatprep.subr.mxu0 0.0
    %232 = vmatpush1.msra.mxu0 0.0
    %233 = vmatprep.subr.mxu0 0.0
    %234 = vmatpush1.msra.mxu0 0.0
    %235 = vmatprep.subr.mxu0 0.0
    %236 = vmatpush1.msra.mxu0 0.0
    %237 = vmatprep.subr.mxu0 0.0
    %238 = vmatpush1.msra.mxu0 0.0
    %239 = vmatprep.subr.mxu0 0.0
    %240 = vmatpush1.msra.mxu0 0.0
    %241 = vmatprep.subr.mxu0 0.0
    %242 = vmatpush1.msra.mxu0 0.0
    %243 = vmatprep.subr.mxu0 0.0
    %244 = vmatpush1.msra.mxu0 0.0
    %245 = vmatprep.subr.mxu0 0.0
    %246 = vmatpush1.msra.mxu0 0.0
    %247 = vmatprep.subr.mxu0 0.0
    %248 = vmatpush1.msra.mxu0 0.0
    %249 = vmatprep.subr.mxu0 0.0
    %250 = vmatpush1.msra.mxu0 0.0
    %251 = vmatprep.mubr.f32.mxu0 0.0
    %252 = vmatmul.mubr.f32.gmra.mrb[0].mxu0 %v163
    %v253 = vpop.f32.mrb[0].mxu0
    %v254 = vadd.f32 %v185, %v253
    %v255 = vpop.f32.mrb[0].mxu0
    %256 = vdwg.mxu0
    %v257 = vmax.f32 %v254, 0.0
    %v258 = vld [vmem:[#allocation8] sm:$0xff]
    %v259 = vld [vmem:[#allocation8 + $0x8] sm:$0xff]
    %v260 = vld [vmem:[#allocation8 + $0x10] sm:$0xff]
    %v261 = vld [vmem:[#allocation8 + $0x18] sm:$0xff]
    %v262 = vld [vmem:[#allocation8 + $0x20] sm:$0xff]
    %v263 = vld [vmem:[#allocation8 + $0x28] sm:$0xff]
    %v264 = vld [vmem:[#allocation8 + $0x30] sm:$0xff]
    %v265 = vld [vmem:[#allocation8 + $0x38] sm:$0xff]
    %v266 = vld [vmem:[#allocation8 + $0x40] sm:$0xff]
    %v267 = vld [vmem:[#allocation8 + $0x48] sm:$0xff]
    %v268 = vld [vmem:[#allocation8 + $0x50] sm:$0xff]
    %v269 = vld [vmem:[#allocation8 + $0x58] sm:$0xff]
    %v270 = vld [vmem:[#allocation8 + $0x60] sm:$0xff]
    %v271 = vld [vmem:[#allocation8 + $0x68] sm:$0xff]
    %v272 = vld [vmem:[#allocation8 + $0x70] sm:$0xff]
    %v273 = vld [vmem:[#allocation8 + $0x78] sm:$0xff]
    %v274 = vld [vmem:[%s6] sm:$0x1]
    %v276 = vlaneseq
    %v277 = vshrl.u32 %v276, 7
    %v278 = vsub.s32 0, %v277
    %v279 = vrot.slane %v274, %v278
    %281 = vmatprep.subr.mxu0 0.0
    %282 = vmatpush1.msra.mxu0 %v258
    %283 = vmatprep.subr.mxu0 0.0
    %284 = vmatpush1.msra.mxu0 %v259
    %285 = vmatprep.subr.mxu0 0.0
    %286 = vmatpush1.msra.mxu0 %v260
    %287 = vmatprep.subr.mxu0 0.0
    %288 = vmatpush1.msra.mxu0 %v261
    %289 = vmatprep.subr.mxu0 0.0
    %290 = vmatpush1.msra.mxu0 %v262
    %291 = vmatprep.subr.mxu0 0.0
    %292 = vmatpush1.msra.mxu0 %v263
    %293 = vmatprep.subr.mxu0 0.0
    %294 = vmatpush1.msra.mxu0 %v264
    %295 = vmatprep.subr.mxu0 0.0
    %296 = vmatpush1.msra.mxu0 %v265
    %297 = vmatprep.subr.mxu0 0.0
    %298 = vmatpush1.msra.mxu0 %v266
    %299 = vmatprep.subr.mxu0 0.0
    %300 = vmatpush1.msra.mxu0 %v267
    %301 = vmatprep.subr.mxu0 0.0
    %302 = vmatpush1.msra.mxu0 %v268
    %303 = vmatprep.subr.mxu0 0.0
    %304 = vmatpush1.msra.mxu0 %v269
    %305 = vmatprep.subr.mxu0 0.0
    %306 = vmatpush1.msra.mxu0 %v270
    %307 = vmatprep.subr.mxu0 0.0
    %308 = vmatpush1.msra.mxu0 %v271
    %309 = vmatprep.subr.mxu0 0.0
    %310 = vmatpush1.msra.mxu0 %v272
    %311 = vmatprep.subr.mxu0 0.0
    %312 = vmatpush1.msra.mxu0 %v273
    %313 = vmatprep.subr.mxu0 0.0
    %314 = vmatpush1.msra.mxu0 0.0
    %315 = vmatprep.subr.mxu0 0.0
    %316 = vmatpush1.msra.mxu0 0.0
    %317 = vmatprep.subr.mxu0 0.0
    %318 = vmatpush1.msra.mxu0 0.0
    %319 = vmatprep.subr.mxu0 0.0
    %320 = vmatpush1.msra.mxu0 0.0
    %321 = vmatprep.subr.mxu0 0.0
    %322 = vmatpush1.msra.mxu0 0.0
    %323 = vmatprep.subr.mxu0 0.0
    %324 = vmatpush1.msra.mxu0 0.0
    %325 = vmatprep.subr.mxu0 0.0
    %326 = vmatpush1.msra.mxu0 0.0
    %327 = vmatprep.subr.mxu0 0.0
    %328 = vmatpush1.msra.mxu0 0.0
    %329 = vmatprep.subr.mxu0 0.0
    %330 = vmatpush1.msra.mxu0 0.0
    %331 = vmatprep.subr.mxu0 0.0
    %332 = vmatpush1.msra.mxu0 0.0
    %333 = vmatprep.subr.mxu0 0.0
    %334 = vmatpush1.msra.mxu0 0.0
    %335 = vmatprep.subr.mxu0 0.0
    %336 = vmatpush1.msra.mxu0 0.0
    %337 = vmatprep.subr.mxu0 0.0
    %338 = vmatpush1.msra.mxu0 0.0
    %339 = vmatprep.subr.mxu0 0.0
    %340 = vmatpush1.msra.mxu0 0.0
    %341 = vmatprep.subr.mxu0 0.0
    %342 = vmatpush1.msra.mxu0 0.0
    %343 = vmatprep.subr.mxu0 0.0
    %344 = vmatpush1.msra.mxu0 0.0
    %345 = vmatprep.mubr.f32.mxu0 0.0
    %346 = vmatmul.mubr.f32.gmra.mrb[0].mxu0 %v257
    %v347 = vpop.f32.mrb[0].mxu0
    %v348 = vadd.f32 %v279, %v347
    %v349 = vpop.f32.mrb[0].mxu0
    %350 = vdwg.mxu0
    %351 = vst [vmem:[#allocation10] sm:$0xff] %v348
    // Predicated region
    $region46: #{tpu_custom_call.1} parent=1 // pred_check
      _
    $region47: #{tpu_custom_call.1} parent=1 // pred_check_branch
      %353 = sbr.rel (0) target = $region49
    $region48: #{tpu_custom_call.1} parent=1 // pred_region
      %s355 = ssub.s32 128, 32
      %356 = vsyncadd [#allocation4], %s355
      %s357 = sshll.u32 [#allocation10], 4
      %s358 = int_to_ptr.vmem [resolvable:$true] %s357
      %363 = dma.vmem_to_hbm [thread:$0]  %s358, 32, %s7, [#allocation4], 32, 32, 2
    $region49: #{tpu_custom_call.1} parent=1 // pred_fallthru
      _
    // Predicated region
    $region50: #{tpu_custom_call.1} parent=1 // pred_check
      _
    $region51: #{tpu_custom_call.1} parent=1 // pred_check_branch
      %365 = sbr.rel (0) target = $region53
    $region52: #{tpu_custom_call.1} parent=1 // pred_region
      %366 = dma.done [#allocation4], 128
    $region53: #{tpu_custom_call.1} parent=1 // pred_fallthru
      _
    %367 = vsyncpa [#allocation3], 1
    %368 = vsyncpa [#allocation6], 1
    %369 = vsyncpa [#allocation9], 1
    %370 = vsyncpa [#allocation4], 1

</llo_original>
